<compile_context>
chip_gen: v5e
topology: v5e:2x2
jax: 0.10.0
libtpu: 0.0.40
codegen_flags: <defaults>
</compile_context>

<pallas_src>
import functools

import jax
import jax.numpy as jnp
from jax.experimental import pallas as pl
from jax.experimental.pallas import tpu as pltpu


def _attention_kernel(mode, *refs):
    if mode == "pc":
        l_ref, g_ref, u_ref, a_ref, ga_ref = refs
    else:  # 'dp'
        l_ref, g_ref, a_ref, ga_ref = refs

    l = l_ref[...]                                  # (Bt, C, S), native dtype
    g = g_ref[...].astype(jnp.float32)              # (Bt, C)

    # Compatibility score c[b, s] = sum_c v[b, c] * l[b, c, s]
    # VPU multiply + XLU sublane reduce (f32 accumulation via promotion).
    if mode == "pc":
        u = u_ref[...].astype(jnp.float32)          # (1, C)
        # (l + g) . u  ==  l . u  +  (g . u)  -> per-batch scalar bias
        bias = jnp.sum(g * u, axis=-1, keepdims=True)            # (Bt, 1)
        c = jnp.sum(l * u[:, :, None], axis=1) + bias            # (Bt, S)
    else:
        c = jnp.sum(l * g[:, :, None], axis=1)                   # (Bt, S)

    # Numerically-stable softmax over spatial positions, per batch row.
    m = jnp.max(c, axis=-1, keepdims=True)
    e = jnp.exp(c - m)
    denom = jnp.sum(e, axis=-1, keepdims=True)                   # (Bt, 1)
    # EUP reciprocal (free slot) + one Newton step on the tiny (Bt,1) vector to
    # restore ~f32 accuracy; the broadcast over (Bt, S) is a multiply, not a divide.
    inv = pl.reciprocal(denom, approx=True)
    inv = inv * (2.0 - denom * inv)
    a = e * inv                                                  # (Bt, S)
    a_ref[...] = a.astype(a_ref.dtype)

    # Weighted combination ga[b, c] = sum_s a[b, s] * l[b, c, s]
    # VPU multiply + XLU lane reduce.
    ga = jnp.sum(l * a[:, None, :], axis=2)                      # (Bt, C)
    ga_ref[...] = ga.astype(ga_ref.dtype)


def _vmem_limit_bytes():
    """Derive a scoped-VMEM limit from the actual chip (64 MiB on v7x,
    128 MiB on v5e/v6e); conservative fallback if the query is unavailable."""
    try:
        cap = pltpu.get_tpu_info().vmem_capacity_bytes
    except Exception:  # pragma: no cover - older jax / non-TPU tracer
        cap = 64 * 1024 * 1024
    return min(int(cap * 0.75), 100 * 1024 * 1024)


def _pick_block_n(n_pad, per_n_bytes, budget):
    """Largest multiple-of-8 divisor of n_pad whose footprint fits `budget`.

    Never below 8 (sublane density); when n_pad >= 16 the block is capped at
    n_pad // 2 so the grid keeps >= 2 steps (lets v7x's two TensorCores both
    work via the 'parallel' batch axis; costs ~nothing on v5e/v6e).
    """
    cap = n_pad if n_pad < 16 else n_pad // 2
    best = min(8, n_pad)
    bt = 8
    while bt <= cap:
        if n_pad % bt == 0 and bt * per_n_bytes <= budget:
            best = bt
        bt += 8
    return best


def attention_forward(x_nchw, g, u=None, mode: str = "pc", block_n=None):
    """x_nchw: (N, C, H, W) local features, g: (N, C) global feature,
    u: (C,) 1x1-conv weight (used only for mode='pc').
    Returns (attention_map (N,1,H,W), weighted_combination (N,C))."""
    N, C, H, W = x_nchw.shape
    S = H * W

    # Free layout change (no data movement): NCHW -> (N, C, S).
    l = x_nchw.reshape(N, C, S)
    g2 = g.reshape(N, C)

    # Pad batch to a multiple of 8 so blocks stay sublane-dense (no-op when
    # N is already a multiple of 8, which is the common case).
    n_pad = ((N + 7) // 8) * 8
    if n_pad != N:
        l = jnp.pad(l, ((0, n_pad - N), (0, 0), (0, 0)))
        g2 = jnp.pad(g2, ((0, n_pad - N), (0, 0)))

    vmem_limit = _vmem_limit_bytes()
    itemsize = jnp.dtype(x_nchw.dtype).itemsize
    # Per batch row: 2x double-buffered l input + ~2 block-sized f32 elementwise
    # temps inside the kernel + double-buffered f32 outputs / g.
    per_n = C * S * (2 * itemsize + 2 * 4) + 2 * 4 * (S + 2 * C)
    if block_n is None:
        block_n = _pick_block_n(n_pad, per_n, int(vmem_limit * 0.8))
    assert n_pad % block_n == 0
    grid = (n_pad // block_n,)

    in_specs = [
        pl.BlockSpec((block_n, C, S), lambda i: (i, 0, 0)),
        pl.BlockSpec((block_n, C), lambda i: (i, 0)),
    ]
    args = [l, g2]
    if mode == "pc":
        if u is None:
            raise ValueError("mode='pc' requires the 1x1-conv weight u")
        in_specs.append(pl.BlockSpec((1, C), lambda i: (0, 0)))
        args.append(u.reshape(1, C))

    kernel = functools.partial(_attention_kernel, mode)

    a_out, ga_out = pl.pallas_call(
        kernel,
        out_shape=(
            jax.ShapeDtypeStruct((n_pad, S), jnp.float32),   # lane-dense attn map
            jax.ShapeDtypeStruct((n_pad, C), jnp.float32),   # lane-dense weighted comb
        ),
        grid_spec=pltpu.PrefetchScalarGridSpec(
            num_scalar_prefetch=0,
            grid=grid,
            in_specs=in_specs,
            out_specs=[
                pl.BlockSpec((block_n, S), lambda i: (i, 0)),
                pl.BlockSpec((block_n, C), lambda i: (i, 0)),
            ],
        ),
        compiler_params=pltpu.CompilerParams(
            dimension_semantics=("parallel",),
            vmem_limit_bytes=vmem_limit,
        ),
    )(*args)

    a_map = a_out[:N].reshape(N, 1, H, W)    # drop batch padding, free reshape
    g_a = ga_out[:N]
    return a_map, g_a


def _reference(x_nchw, g, u, mode="pc"):
    N, C, H, W = x_nchw.shape
    l = jnp.transpose(x_nchw, (0, 2, 3, 1)).reshape(N, H * W, C)
    if mode == "pc":
        c = jnp.sum((l + g[:, None, :]) * u[None, None, :], axis=-1)
    else:
        c = jnp.sum(l * g[:, None, :], axis=-1)
    a = jax.nn.softmax(c, axis=-1)                           # (N, S)
    ga = jnp.einsum("ns,nsc->nc", a, l)
    return a.reshape(N, 1, H, W), ga


if __name__ == "__main__":
    key = jax.random.PRNGKey(0)
    k1, k2, k3 = jax.random.split(key, 3)

    N, C, H, W = 2, 32, 8, 8
    x = jax.random.normal(k1, (N, C, H, W), dtype=jnp.float32)   # local features
    g = jax.random.normal(k2, (N, C), dtype=jnp.float32)         # global feature
    u = jax.random.normal(k3, (C,), dtype=jnp.float32) * 0.1     # 1x1 conv weight ('pc')

    for mode in ("pc", "dp"):
        a_map, g_a = attention_forward(x, g, u if mode == "pc" else None, mode=mode)
        jax.block_until_ready((a_map, g_a))

        a_ref, ga_ref = _reference(x, g, u, mode=mode)
        assert jnp.allclose(a_map, a_ref, atol=1e-4, rtol=1e-4), f"attn map mismatch ({mode})"
        assert jnp.allclose(g_a, ga_ref, atol=1e-4, rtol=1e-4), f"weighted comb mismatch ({mode})"
        # attention weights must sum to 1 per sample
        assert jnp.allclose(a_map.sum(axis=(1, 2, 3)), jnp.ones((N,)), atol=1e-4)

    # TODO(synk): PyTorch class is abstract (forward/_make_layers raise
    # NotImplementedError); only the implied compatibility-score + softmax +
    # weighted-combination forward semantics are implemented here.
    print("KERNEL_OK")
</pallas_src>

<mosaic_0001>
module attributes {stable_mosaic.version = 11 : i64} {
  func.func @_attention_kernel(%arg0: i32, %arg1: memref<8x32x64xf32, #tpu.memory_space<vmem>>, %arg2: memref<8x32xf32, #tpu.memory_space<vmem>>, %arg3: memref<1x32xf32, #tpu.memory_space<vmem>>, %arg4: memref<8x64xf32, #tpu.memory_space<vmem>>, %arg5: memref<8x32xf32, #tpu.memory_space<vmem>>) attributes {dimension_semantics = [#tpu.dimension_semantics<parallel>], iteration_bounds = array<i64: 1>, scalar_prefetch = 0 : i64, scratch_operands = 0 : i64, tpu.core_type = #tpu.core_type<tc>, window_params = [{transform_indices = @transform_0, window_bounds = array<i64: 8, 32, 64>}, {transform_indices = @transform_1, window_bounds = array<i64: 8, 32>}, {pipeline_mode = #tpu.pipeline_mode<synchronous>, transform_indices = @transform_2, window_bounds = array<i64: 1, 32>}, {transform_indices = @transform_3, window_bounds = array<i64: 8, 64>}, {transform_indices = @transform_4, window_bounds = array<i64: 8, 32>}]} {
    %c0 = arith.constant 0 : index
    %c0_0 = arith.constant 0 : index
    %c0_1 = arith.constant 0 : index
    %0 = vector.load %arg1[%c0, %c0_0, %c0_1] : memref<8x32x64xf32, #tpu.memory_space<vmem>>, vector<8x32x64xf32>
    %c0_2 = arith.constant 0 : index
    %c0_3 = arith.constant 0 : index
    %1 = vector.load %arg2[%c0_2, %c0_3] : memref<8x32xf32, #tpu.memory_space<vmem>>, vector<8x32xf32>
    %c0_4 = arith.constant 0 : index
    %c0_5 = arith.constant 0 : index
    %2 = vector.load %arg3[%c0_4, %c0_5] : memref<1x32xf32, #tpu.memory_space<vmem>>, vector<1x32xf32>
    %3 = vector.broadcast %2 : vector<1x32xf32> to vector<8x32xf32>
    %4 = arith.mulf %1, %3 : vector<8x32xf32>
    %cst = arith.constant dense<0.000000e+00> : vector<8xf32>
    %5 = vector.multi_reduction <add>, %4, %cst [1] : vector<8x32xf32> to vector<8xf32>
    %6 = vector.shape_cast %5 : vector<8xf32> to vector<8x1xf32>
    %7 = vector.shape_cast %2 : vector<1x32xf32> to vector<1x32x1xf32>
    %8 = vector.broadcast %7 : vector<1x32x1xf32> to vector<8x32x64xf32>
    %9 = arith.mulf %0, %8 : vector<8x32x64xf32>
    %cst_6 = arith.constant dense<0.000000e+00> : vector<8x64xf32>
    %10 = vector.multi_reduction <add>, %9, %cst_6 [1] : vector<8x32x64xf32> to vector<8x64xf32>
    %11 = vector.broadcast %6 : vector<8x1xf32> to vector<8x64xf32>
    %12 = arith.addf %10, %11 : vector<8x64xf32>
    %cst_7 = arith.constant dense<0xFF800000> : vector<8xf32>
    %13 = vector.multi_reduction <maximumf>, %12, %cst_7 [1] : vector<8x64xf32> to vector<8xf32>
    %14 = vector.shape_cast %13 : vector<8xf32> to vector<8x1xf32>
    %15 = vector.broadcast %14 : vector<8x1xf32> to vector<8x64xf32>
    %16 = arith.subf %12, %15 : vector<8x64xf32>
    %17 = math.exp %16 : vector<8x64xf32>
    %cst_8 = arith.constant dense<0.000000e+00> : vector<8xf32>
    %18 = vector.multi_reduction <add>, %17, %cst_8 [1] : vector<8x64xf32> to vector<8xf32>
    %19 = vector.shape_cast %18 : vector<8xf32> to vector<8x1xf32>
    %20 = tpu.reciprocal %19 {approx = true} : vector<8x1xf32> -> vector<8x1xf32>
    %21 = arith.mulf %19, %20 : vector<8x1xf32>
    %cst_9 = arith.constant 2.000000e+00 : f32
    %22 = vector.broadcast %cst_9 : f32 to vector<8x1xf32>
    %23 = arith.subf %22, %21 : vector<8x1xf32>
    %24 = arith.mulf %20, %23 : vector<8x1xf32>
    %25 = vector.broadcast %24 : vector<8x1xf32> to vector<8x64xf32>
    %26 = arith.mulf %17, %25 : vector<8x64xf32>
    %c0_10 = arith.constant 0 : index
    %c0_11 = arith.constant 0 : index
    %27 = vector.load %arg4[%c0_10, %c0_11] : memref<8x64xf32, #tpu.memory_space<vmem>>, vector<8x64xf32>
    tpu.vector_store %arg4[%c0_10, %c0_11], %26 {strides = array<i32>} : memref<8x64xf32, #tpu.memory_space<vmem>>, vector<8x64xf32>,
    %28 = vector.shape_cast %26 : vector<8x64xf32> to vector<8x1x64xf32>
    %29 = vector.broadcast %28 : vector<8x1x64xf32> to vector<8x32x64xf32>
    %30 = arith.mulf %0, %29 : vector<8x32x64xf32>
    %cst_12 = arith.constant dense<0.000000e+00> : vector<8x32xf32>
    %31 = vector.multi_reduction <add>, %30, %cst_12 [2] : vector<8x32x64xf32> to vector<8x32xf32>
    %c0_13 = arith.constant 0 : index
    %c0_14 = arith.constant 0 : index
    %32 = vector.load %arg5[%c0_13, %c0_14] : memref<8x32xf32, #tpu.memory_space<vmem>>, vector<8x32xf32>
    tpu.vector_store %arg5[%c0_13, %c0_14], %31 {strides = array<i32>} : memref<8x32xf32, #tpu.memory_space<vmem>>, vector<8x32xf32>,
    return
  }
  func.func @transform_0(%arg0: i32) -> (i32, i32, i32) {
    %c0_i32 = arith.constant 0 : i32
    %c0_i32_0 = arith.constant 0 : i32
    %c0_i32_1 = arith.constant 0 : i32
    return %arg0, %c0_i32, %c0_i32_0 : i32, i32, i32
  }
  func.func @transform_1(%arg0: i32) -> (i32, i32) {
    %c0_i32 = arith.constant 0 : i32
    %c0_i32_0 = arith.constant 0 : i32
    return %arg0, %c0_i32 : i32, i32
  }
  func.func @transform_2(%arg0: i32) -> (i32, i32) {
    %c0_i32 = arith.constant 0 : i32
    %c0_i32_0 = arith.constant 0 : i32
    %c0_i32_1 = arith.constant 0 : i32
    return %c0_i32, %c0_i32_0 : i32, i32
  }
  func.func @transform_3(%arg0: i32) -> (i32, i32) {
    %c0_i32 = arith.constant 0 : i32
    %c0_i32_0 = arith.constant 0 : i32
    return %arg0, %c0_i32 : i32, i32
  }
  func.func @transform_4(%arg0: i32) -> (i32, i32) {
    %c0_i32 = arith.constant 0 : i32
    %c0_i32_0 = arith.constant 0 : i32
    return %arg0, %c0_i32 : i32, i32
  }
}

</mosaic_0001>

<llo_original>
// kernel: tpu_custom_call.1
$region0: #{tpu_custom_call.1}
  #allocation0 [shape = 'u32[]', space=smem, size = 0x4, offset = 0x4, fixed_abs, tag = 'smem constant byte address 0x4 - core index']
  #allocation1 [shape = 'u32[72,128]{1,0:T(1,128)}', space=vmem, size = 0x9000, scoped, tag = 'internal scratch']
  %s0 = inlined_call_operand.hbm [shape: f32[8,32,64], index: 0, kind: input, shape index: {}]
  %s1 = inlined_call_operand.hbm [shape: f32[8,32], index: 1, kind: input, shape index: {}]
  %s2 = inlined_call_operand.vmem [shape: f32[1,32], index: 2, kind: input, shape index: {}]
  %s3 = inlined_call_operand.hbm [shape: f32[8,64], index: 3, kind: output, shape index: {0}]
  %s4 = inlined_call_operand.hbm [shape: f32[8,32], index: 4, kind: output, shape index: {1}]
  %5 = xla_tuple %s3, %s4
  %s6 = sld [smem:[#allocation0]]
  $region38: #{tpu_custom_call.1} parent=0
    _
  %s8 = ssub.s32 1, %s6
  %s9 = scalar_select 0, %s8, %s6
  $region1: #{tpu_custom_call.1} parent=0
    #allocation2 [shape = 'u8[131072]{0}', space=vmem, size = 0x20000, scoped, tag = 'input window, operand 0, single buffered']
    #allocation3 [shape = 's32[1]{0}', space=sflag, size = 0x4, scoped, tag = 'scoped memory for tpu_custom_call.1']
    #allocation4 [shape = 's32[1]{0}', space=sflag, size = 0x4, scoped, tag = 'scoped memory for tpu_custom_call.1']
    #allocation5 [shape = 'u8[4096]{0}', space=vmem, size = 0x1000, scoped, tag = 'input window, operand 1, single buffered']
    #allocation6 [shape = 's32[1]{0}', space=sflag, size = 0x4, scoped, tag = 'scoped memory for tpu_custom_call.1']
    #allocation7 [shape = 'u8[4096]{0}', space=vmem, size = 0x1000, scoped, tag = 'output window, operand 0, single buffered']
    #allocation8 [shape = 'u8[4096]{0}', space=vmem, size = 0x1000, scoped, tag = 'output window, operand 1, single buffered']
    #allocation9 [shape = 's32[1]{0}', space=sflag, size = 0x4, scoped, tag = 'scoped memory for tpu_custom_call.1']
    %10 = vsyncpa [#allocation3], 0
    %11 = vsyncpa [#allocation6], 0
    %12 = vsyncpa [#allocation4], 0
    %13 = vsyncpa [#allocation9], 0
    // Predicated region
    $region2: #{tpu_custom_call.1} parent=1 // pred_check
      _
    $region3: #{tpu_custom_call.1} parent=1 // pred_check_branch
      %15 = sbr.rel (0) target = $region5
    $region4: #{tpu_custom_call.1} parent=1 // pred_region
      %17 = vsyncadd [#allocation3], 0
      %s18 = sshll.u32 %s0, 4
      %s19 = int_to_ptr.hbm [resolvable:$true] %s18
      %s20 = sshll.u32 [#allocation2], 4
      %s21 = int_to_ptr.vmem [resolvable:$true] %s20
      %26 = dma.hbm_to_vmem [thread:$0]  %s19, 4096, %s21, [#allocation3], 128, 128, 8
    $region5: #{tpu_custom_call.1} parent=1 // pred_fallthru
      _
    // Predicated region
    $region6: #{tpu_custom_call.1} parent=1 // pred_check
      _
    $region7: #{tpu_custom_call.1} parent=1 // pred_check_branch
      %28 = sbr.rel (0) target = $region9
    $region8: #{tpu_custom_call.1} parent=1 // pred_region
      %30 = vsyncadd [#allocation6], 0
      %s32 = sshll.u32 %s1, 4
      %s33 = int_to_ptr.hbm [resolvable:$true] %s32
      %s34 = sshll.u32 [#allocation5], 4
      %s35 = int_to_ptr.vmem [resolvable:$true] %s34
      %37 = dma.hbm_to_vmem [thread:$0]  %s33, 128, %s35, [#allocation6]
    $region9: #{tpu_custom_call.1} parent=1 // pred_fallthru
      _
    // Predicated region
    $region10: #{tpu_custom_call.1} parent=1 // pred_check
      _
    $region11: #{tpu_custom_call.1} parent=1 // pred_check_branch
      %39 = sbr.rel (0) target = $region13
    $region12: #{tpu_custom_call.1} parent=1 // pred_region
      _
    $region13: #{tpu_custom_call.1} parent=1 // pred_fallthru
      _
    // Predicated region
    $region14: #{tpu_custom_call.1} parent=1 // pred_check
      _
    $region15: #{tpu_custom_call.1} parent=1 // pred_check_branch
      %41 = sbr.rel (0) target = $region17
    $region16: #{tpu_custom_call.1} parent=1 // pred_region
      %43 = dma.done [#allocation3], 4096
    $region17: #{tpu_custom_call.1} parent=1 // pred_fallthru
      _
    // Predicated region
    $region18: #{tpu_custom_call.1} parent=1 // pred_check
      _
    $region19: #{tpu_custom_call.1} parent=1 // pred_check_branch
      %45 = sbr.rel (0) target = $region21
    $region20: #{tpu_custom_call.1} parent=1 // pred_region
      %47 = dma.done [#allocation6], 128
    $region21: #{tpu_custom_call.1} parent=1 // pred_fallthru
      _
    %v48 = vld [vmem:[#allocation2] sm:$0xff]
    %v49 = vld [vmem:[#allocation2 + $0x8] sm:$0xff]
    %v50 = vld [vmem:[#allocation2 + $0x10] sm:$0xff]
    %v51 = vld [vmem:[#allocation2 + $0x18] sm:$0xff]
    %v52 = vld [vmem:[#allocation2 + $0x20] sm:$0xff]
    %v53 = vld [vmem:[#allocation2 + $0x28] sm:$0xff]
    %v54 = vld [vmem:[#allocation2 + $0x30] sm:$0xff]
    %v55 = vld [vmem:[#allocation2 + $0x38] sm:$0xff]
    %v56 = vld [vmem:[#allocation2 + $0x40] sm:$0xff]
    %v57 = vld [vmem:[#allocation2 + $0x48] sm:$0xff]
    %v58 = vld [vmem:[#allocation2 + $0x50] sm:$0xff]
    %v59 = vld [vmem:[#allocation2 + $0x58] sm:$0xff]
    %v60 = vld [vmem:[#allocation2 + $0x60] sm:$0xff]
    %v61 = vld [vmem:[#allocation2 + $0x68] sm:$0xff]
    %v62 = vld [vmem:[#allocation2 + $0x70] sm:$0xff]
    %v63 = vld [vmem:[#allocation2 + $0x78] sm:$0xff]
    %v64 = vld [vmem:[#allocation2 + $0x80] sm:$0xff]
    %v65 = vld [vmem:[#allocation2 + $0x88] sm:$0xff]
    %v66 = vld [vmem:[#allocation2 + $0x90] sm:$0xff]
    %v67 = vld [vmem:[#allocation2 + $0x98] sm:$0xff]
    %v68 = vld [vmem:[#allocation2 + $0xa0] sm:$0xff]
    %v69 = vld [vmem:[#allocation2 + $0xa8] sm:$0xff]
    %v70 = vld [vmem:[#allocation2 + $0xb0] sm:$0xff]
    %v71 = vld [vmem:[#allocation2 + $0xb8] sm:$0xff]
    %v72 = vld [vmem:[#allocation2 + $0xc0] sm:$0xff]
    %v73 = vld [vmem:[#allocation2 + $0xc8] sm:$0xff]
    %v74 = vld [vmem:[#allocation2 + $0xd0] sm:$0xff]
    %v75 = vld [vmem:[#allocation2 + $0xd8] sm:$0xff]
    %v76 = vld [vmem:[#allocation2 + $0xe0] sm:$0xff]
    %v77 = vld [vmem:[#allocation2 + $0xe8] sm:$0xff]
    %v78 = vld [vmem:[#allocation2 + $0xf0] sm:$0xff]
    %v79 = vld [vmem:[#allocation2 + $0xf8] sm:$0xff]
    %v80 = vld [vmem:[#allocation5] sm:$0xff]
    %v81 = vld [vmem:[%s2] sm:$0x1]
    %v83 = vperm.slane %v81, 0
    %v85 = vmul.f32 %v80, %v83
    %vm86 = vcmask 261120
    %v87 = vsel %vm86, %v85, 0.0
    %88 = vadd.xlane.f32.xlu0 %v87
    %v89 = vpop.xlane.xlu0 %88
    %v90 = vperm.slane %v81, 0
    %v91 = vlaneseq
    %v92 = vshrl.u32 %v91, 7
    %94 = vset.pattern.permute.xlu0 %v92
    %95 = vperm.xlu0 %94, %v90
    %v96 = vpop.permute.xlu0 %95
    %v97 = vlaneseq
    %v98 = vshrl.u32 %v97, 7
    %v99 = vadd.s32 %v98, 8
    %100 = vset.pattern.permute.xlu0 %v99
    %101 = vperm.xlu0 %100, %v90
    %v102 = vpop.permute.xlu0 %101
    %v103 = vlaneseq
    %v104 = vshrl.u32 %v103, 7
    %v105 = vadd.s32 %v104, 16
    %106 = vset.pattern.permute.xlu0 %v105
    %107 = vperm.xlu0 %106, %v90
    %v108 = vpop.permute.xlu0 %107
    %v109 = vlaneseq
    %v110 = vshrl.u32 %v109, 7
    %v111 = vadd.s32 %v110, 24
    %112 = vset.pattern.permute.xlu0 %v111
    %113 = vperm.xlu0 %112, %v90
    %v114 = vpop.permute.xlu0 %113
    %v115 = vmul.f32 %v48, %v96
    %v116 = vmul.f32 %v49, %v102
    %v117 = vmul.f32 %v50, %v108
    %v118 = vmul.f32 %v51, %v114
    %v119 = vmul.f32 %v52, %v96
    %v120 = vmul.f32 %v53, %v102
    %v121 = vmul.f32 %v54, %v108
    %v122 = vmul.f32 %v55, %v114
    %v123 = vmul.f32 %v56, %v96
    %v124 = vmul.f32 %v57, %v102
    %v125 = vmul.f32 %v58, %v108
    %v126 = vmul.f32 %v59, %v114
    %v127 = vmul.f32 %v60, %v96
    %v128 = vmul.f32 %v61, %v102
    %v129 = vmul.f32 %v62, %v108
    %v130 = vmul.f32 %v63, %v114
    %v131 = vmul.f32 %v64, %v96
    %v132 = vmul.f32 %v65, %v102
    %v133 = vmul.f32 %v66, %v108
    %v134 = vmul.f32 %v67, %v114
    %v135 = vmul.f32 %v68, %v96
    %v136 = vmul.f32 %v69, %v102
    %v137 = vmul.f32 %v70, %v108
    %v138 = vmul.f32 %v71, %v114
    %v139 = vmul.f32 %v72, %v96
    %v140 = vmul.f32 %v73, %v102
    %v141 = vmul.f32 %v74, %v108
    %v142 = vmul.f32 %v75, %v114
    %v143 = vmul.f32 %v76, %v96
    %v144 = vmul.f32 %v77, %v102
    %v145 = vmul.f32 %v78, %v108
    %v146 = vmul.f32 %v79, %v114
    %vm147 = vcmask 523264
    %v148 = vsel %vm147, %v115, 0.0
    %v149 = vsel %vm147, %v116, 0.0
    %v150 = vadd.f32 %v148, %v149
    %v151 = vsel %vm147, %v117, 0.0
    %v152 = vadd.f32 %v150, %v151
    %v153 = vsel %vm147, %v118, 0.0
    %v154 = vadd.f32 %v152, %v153
    %v155 = vrot.slane %v154, 4
    %v156 = vadd.f32 %v154, %v155
    %v157 = vrot.slane %v156, 2
    %v158 = vadd.f32 %v156, %v157
    %v159 = vrot.slane %v158, 1
    %v160 = vadd.f32 %v158, %v159
    %v161 = vsel %vm147, %v119, 0.0
    %v162 = vsel %vm147, %v120, 0.0
    %v163 = vadd.f32 %v161, %v162
    %v164 = vsel %vm147, %v121, 0.0
    %v165 = vadd.f32 %v163, %v164
    %v166 = vsel %vm147, %v122, 0.0
    %v167 = vadd.f32 %v165, %v166
    %v168 = vrot.slane %v167, 4
    %v169 = vadd.f32 %v167, %v168
    %v170 = vrot.slane %v169, 2
    %v171 = vadd.f32 %v169, %v170
    %v172 = vrot.slane %v171, 1
    %v173 = vadd.f32 %v171, %v172
    %v174 = vsel %vm147, %v123, 0.0
    %v175 = vsel %vm147, %v124, 0.0
    %v176 = vadd.f32 %v174, %v175
    %v177 = vsel %vm147, %v125, 0.0
    %v178 = vadd.f32 %v176, %v177
    %v179 = vsel %vm147, %v126, 0.0
    %v180 = vadd.f32 %v178, %v179
    %v181 = vrot.slane %v180, 4
    %v182 = vadd.f32 %v180, %v181
    %v183 = vrot.slane %v182, 2
    %v184 = vadd.f32 %v182, %v183
    %v185 = vrot.slane %v184, 1
    %v186 = vadd.f32 %v184, %v185
    %v187 = vsel %vm147, %v127, 0.0
    %v188 = vsel %vm147, %v128, 0.0
    %v189 = vadd.f32 %v187, %v188
    %v190 = vsel %vm147, %v129, 0.0
    %v191 = vadd.f32 %v189, %v190
    %v192 = vsel %vm147, %v130, 0.0
    %v193 = vadd.f32 %v191, %v192
    %v194 = vrot.slane %v193, 4
    %v195 = vadd.f32 %v193, %v194
    %v196 = vrot.slane %v195, 2
    %v197 = vadd.f32 %v195, %v196
    %v198 = vrot.slane %v197, 1
    %v199 = vadd.f32 %v197, %v198
    %v200 = vsel %vm147, %v131, 0.0
    %v201 = vsel %vm147, %v132, 0.0
    %v202 = vadd.f32 %v200, %v201
    %v203 = vsel %vm147, %v133, 0.0
    %v204 = vadd.f32 %v202, %v203
    %v205 = vsel %vm147, %v134, 0.0
    %v206 = vadd.f32 %v204, %v205
    %v207 = vrot.slane %v206, 4
    %v208 = vadd.f32 %v206, %v207
    %v209 = vrot.slane %v208, 2
    %v210 = vadd.f32 %v208, %v209
    %v211 = vrot.slane %v210, 1
    %v212 = vadd.f32 %v210, %v211
    %v213 = vsel %vm147, %v135, 0.0
    %v214 = vsel %vm147, %v136, 0.0
    %v215 = vadd.f32 %v213, %v214
    %v216 = vsel %vm147, %v137, 0.0
    %v217 = vadd.f32 %v215, %v216
    %v218 = vsel %vm147, %v138, 0.0
    %v219 = vadd.f32 %v217, %v218
    %v220 = vrot.slane %v219, 4
    %v221 = vadd.f32 %v219, %v220
    %v222 = vrot.slane %v221, 2
    %v223 = vadd.f32 %v221, %v222
    %v224 = vrot.slane %v223, 1
    %v225 = vadd.f32 %v223, %v224
    %v226 = vsel %vm147, %v139, 0.0
    %v227 = vsel %vm147, %v140, 0.0
    %v228 = vadd.f32 %v226, %v227
    %v229 = vsel %vm147, %v141, 0.0
    %v230 = vadd.f32 %v228, %v229
    %v231 = vsel %vm147, %v142, 0.0
    %v232 = vadd.f32 %v230, %v231
    %v233 = vrot.slane %v232, 4
    %v234 = vadd.f32 %v232, %v233
    %v235 = vrot.slane %v234, 2
    %v236 = vadd.f32 %v234, %v235
    %v237 = vrot.slane %v236, 1
    %v238 = vadd.f32 %v236, %v237
    %v239 = vsel %vm147, %v143, 0.0
    %v240 = vsel %vm147, %v144, 0.0
    %v241 = vadd.f32 %v239, %v240
    %v242 = vsel %vm147, %v145, 0.0
    %v243 = vadd.f32 %v241, %v242
    %v244 = vsel %vm147, %v146, 0.0
    %v245 = vadd.f32 %v243, %v244
    %v246 = vrot.slane %v245, 4
    %v247 = vadd.f32 %v245, %v246
    %v248 = vrot.slane %v247, 2
    %v249 = vadd.f32 %v247, %v248
    %v250 = vrot.slane %v249, 1
    %v251 = vadd.f32 %v249, %v250
    %v253 = vrot.slane %v89, 1
    %v254 = vrot.slane %v89, 2
    %v255 = vrot.slane %v89, 3
    %v256 = vrot.slane %v89, 4
    %v257 = vrot.slane %v89, 5
    %v258 = vrot.slane %v89, 6
    %v259 = vrot.slane %v89, 7
    %v268 = vadd.f32 %v160, %v89
    %v269 = vadd.f32 %v173, %v253
    %v270 = vadd.f32 %v186, %v254
    %v271 = vadd.f32 %v199, %v255
    %v272 = vadd.f32 %v212, %v256
    %v273 = vadd.f32 %v225, %v257
    %v274 = vadd.f32 %v238, %v258
    %v275 = vadd.f32 %v251, %v259
    %v284 = vrot.slane %v269, 7
    %vm285 = vcmask 1041409
    %v286 = vsel %vm285, %v284, %v268
    %v287 = vrot.slane %v270, 6
    %vm288 = vcmask 1042434
    %v289 = vsel %vm288, %v287, %v286
    %v290 = vrot.slane %v271, 5
    %vm291 = vcmask 1043459
    %v292 = vsel %vm291, %v290, %v289
    %v293 = vrot.slane %v272, 4
    %vm294 = vcmask 1044484
    %v295 = vsel %vm294, %v293, %v292
    %v296 = vrot.slane %v273, 3
    %vm297 = vcmask 1045509
    %v298 = vsel %vm297, %v296, %v295
    %v299 = vrot.slane %v274, 2
    %vm300 = vcmask 1046534
    %v301 = vsel %vm300, %v299, %v298
    %v302 = vrot.slane %v275, 1
    %vm303 = vcmask 1047559
    %v304 = vsel %vm303, %v302, %v301
    %v306 = vsel %vm147, %v304, -inf
    %307 = vmax.xlane.f32.xlu0 %v306
    %v308 = vpop.xlane.xlu0 %307
    %v310 = vrot.slane %v308, 1
    %v311 = vrot.slane %v308, 2
    %v312 = vrot.slane %v308, 3
    %v313 = vrot.slane %v308, 4
    %v314 = vrot.slane %v308, 5
    %v315 = vrot.slane %v308, 6
    %v316 = vrot.slane %v308, 7
    %v325 = vsub.f32 %v268, %v308
    %v326 = vsub.f32 %v269, %v310
    %v327 = vsub.f32 %v270, %v311
    %v328 = vsub.f32 %v271, %v312
    %v329 = vsub.f32 %v272, %v313
    %v330 = vsub.f32 %v273, %v314
    %v331 = vsub.f32 %v274, %v315
    %v332 = vsub.f32 %v275, %v316
    %v333 = vmul.f32 %v325, 1.442695
    %v334 = vpow.pop %v333
    %v335 = vmul.f32 %v326, 1.442695
    %v336 = vpow.pop %v335
    %v337 = vmul.f32 %v327, 1.442695
    %v338 = vpow.pop %v337
    %v339 = vmul.f32 %v328, 1.442695
    %v340 = vpow.pop %v339
    %v341 = vmul.f32 %v329, 1.442695
    %v342 = vpow.pop %v341
    %v343 = vmul.f32 %v330, 1.442695
    %v344 = vpow.pop %v343
    %v345 = vmul.f32 %v331, 1.442695
    %v346 = vpow.pop %v345
    %v347 = vmul.f32 %v332, 1.442695
    %v348 = vpow.pop %v347
    %v357 = vrot.slane %v336, 7
    %v358 = vsel %vm285, %v357, %v334
    %v359 = vrot.slane %v338, 6
    %v360 = vsel %vm288, %v359, %v358
    %v361 = vrot.slane %v340, 5
    %v362 = vsel %vm291, %v361, %v360
    %v363 = vrot.slane %v342, 4
    %v364 = vsel %vm294, %v363, %v362
    %v365 = vrot.slane %v344, 3
    %v366 = vsel %vm297, %v365, %v364
    %v367 = vrot.slane %v346, 2
    %v368 = vsel %vm300, %v367, %v366
    %v369 = vrot.slane %v348, 1
    %v370 = vsel %vm303, %v369, %v368
    %v372 = vsel %vm147, %v370, 0.0
    %373 = vadd.xlane.f32.xlu0 %v372
    %v374 = vpop.xlane.xlu0 %373
    %v375 = vrcp.pop %v374
    %v376 = vmul.f32 %v374, %v375
    %v377 = vsub.f32 2.0, %v376
    %v378 = vmul.f32 %v375, %v377
    %v380 = vrot.slane %v378, 1
    %v381 = vrot.slane %v378, 2
    %v382 = vrot.slane %v378, 3
    %v383 = vrot.slane %v378, 4
    %v384 = vrot.slane %v378, 5
    %v385 = vrot.slane %v378, 6
    %v386 = vrot.slane %v378, 7
    %v395 = vmul.f32 %v334, %v378
    %v396 = vmul.f32 %v336, %v380
    %v397 = vmul.f32 %v338, %v381
    %v398 = vmul.f32 %v340, %v382
    %v399 = vmul.f32 %v342, %v383
    %v400 = vmul.f32 %v344, %v384
    %v401 = vmul.f32 %v346, %v385
    %v402 = vmul.f32 %v348, %v386
    %v411 = vrot.slane %v396, 7
    %v412 = vsel %vm285, %v411, %v395
    %v413 = vrot.slane %v397, 6
    %v414 = vsel %vm288, %v413, %v412
    %v415 = vrot.slane %v398, 5
    %v416 = vsel %vm291, %v415, %v414
    %v417 = vrot.slane %v399, 4
    %v418 = vsel %vm294, %v417, %v416
    %v419 = vrot.slane %v400, 3
    %v420 = vsel %vm297, %v419, %v418
    %v421 = vrot.slane %v401, 2
    %v422 = vsel %vm300, %v421, %v420
    %v423 = vrot.slane %v402, 1
    %v424 = vsel %vm303, %v423, %v422
    %426 = vst.msk [vmem:[#allocation7] sm:$0xff] %vm147, %v424
    %v427 = vperm.slane %v395, 0
    %v428 = vperm.slane %v396, 0
    %v429 = vperm.slane %v397, 0
    %v430 = vperm.slane %v398, 0
    %v431 = vperm.slane %v399, 0
    %v432 = vperm.slane %v400, 0
    %v433 = vperm.slane %v401, 0
    %v434 = vperm.slane %v402, 0
    %v435 = vmul.f32 %v48, %v427
    %v436 = vmul.f32 %v49, %v427
    %v437 = vmul.f32 %v50, %v427
    %v438 = vmul.f32 %v51, %v427
    %v439 = vmul.f32 %v52, %v428
    %v440 = vmul.f32 %v53, %v428
    %v441 = vmul.f32 %v54, %v428
    %v442 = vmul.f32 %v55, %v428
    %v443 = vmul.f32 %v56, %v429
    %v444 = vmul.f32 %v57, %v429
    %v445 = vmul.f32 %v58, %v429
    %v446 = vmul.f32 %v59, %v429
    %v447 = vmul.f32 %v60, %v430
    %v448 = vmul.f32 %v61, %v430
    %v449 = vmul.f32 %v62, %v430
    %v450 = vmul.f32 %v63, %v430
    %v451 = vmul.f32 %v64, %v431
    %v452 = vmul.f32 %v65, %v431
    %v453 = vmul.f32 %v66, %v431
    %v454 = vmul.f32 %v67, %v431
    %v455 = vmul.f32 %v68, %v432
    %v456 = vmul.f32 %v69, %v432
    %v457 = vmul.f32 %v70, %v432
    %v458 = vmul.f32 %v71, %v432
    %v459 = vmul.f32 %v72, %v433
    %v460 = vmul.f32 %v73, %v433
    %v461 = vmul.f32 %v74, %v433
    %v462 = vmul.f32 %v75, %v433
    %v463 = vmul.f32 %v76, %v434
    %v464 = vmul.f32 %v77, %v434
    %v465 = vmul.f32 %v78, %v434
    %v466 = vmul.f32 %v79, %v434
    %v467 = vsel %vm147, %v435, 0.0
    %468 = vadd.xlane.f32.xlu0 %v467
    %v469 = vpop.xlane.xlu0 %468
    %v470 = vsel %vm147, %v436, 0.0
    %471 = vadd.xlane.f32.xlu0 %v470
    %v472 = vpop.xlane.xlu0 %471
    %v473 = vsel %vm147, %v437, 0.0
    %474 = vadd.xlane.f32.xlu0 %v473
    %v475 = vpop.xlane.xlu0 %474
    %v476 = vsel %vm147, %v438, 0.0
    %477 = vadd.xlane.f32.xlu0 %v476
    %v478 = vpop.xlane.xlu0 %477
    %v479 = vsel %vm147, %v439, 0.0
    %480 = vadd.xlane.f32.xlu0 %v479
    %v481 = vpop.xlane.xlu0 %480
    %v482 = vsel %vm147, %v440, 0.0
    %483 = vadd.xlane.f32.xlu0 %v482
    %v484 = vpop.xlane.xlu0 %483
    %v485 = vsel %vm147, %v441, 0.0
    %486 = vadd.xlane.f32.xlu0 %v485
    %v487 = vpop.xlane.xlu0 %486
    %v488 = vsel %vm147, %v442, 0.0
    %489 = vadd.xlane.f32.xlu0 %v488
    %v490 = vpop.xlane.xlu0 %489
    %v491 = vsel %vm147, %v443, 0.0
    %492 = vadd.xlane.f32.xlu0 %v491
    %v493 = vpop.xlane.xlu0 %492
    %v494 = vsel %vm147, %v444, 0.0
    %495 = vadd.xlane.f32.xlu0 %v494
    %v496 = vpop.xlane.xlu0 %495
    %v497 = vsel %vm147, %v445, 0.0
    %498 = vadd.xlane.f32.xlu0 %v497
    %v499 = vpop.xlane.xlu0 %498
    %v500 = vsel %vm147, %v446, 0.0
    %501 = vadd.xlane.f32.xlu0 %v500
    %v502 = vpop.xlane.xlu0 %501
    %v503 = vsel %vm147, %v447, 0.0
    %504 = vadd.xlane.f32.xlu0 %v503
    %v505 = vpop.xlane.xlu0 %504
    %v506 = vsel %vm147, %v448, 0.0
    %507 = vadd.xlane.f32.xlu0 %v506
    %v508 = vpop.xlane.xlu0 %507
    %v509 = vsel %vm147, %v449, 0.0
    %510 = vadd.xlane.f32.xlu0 %v509
    %v511 = vpop.xlane.xlu0 %510
    %v512 = vsel %vm147, %v450, 0.0
    %513 = vadd.xlane.f32.xlu0 %v512
    %v514 = vpop.xlane.xlu0 %513
    %v515 = vsel %vm147, %v451, 0.0
    %516 = vadd.xlane.f32.xlu0 %v515
    %v517 = vpop.xlane.xlu0 %516
    %v518 = vsel %vm147, %v452, 0.0
    %519 = vadd.xlane.f32.xlu0 %v518
    %v520 = vpop.xlane.xlu0 %519
    %v521 = vsel %vm147, %v453, 0.0
    %522 = vadd.xlane.f32.xlu0 %v521
    %v523 = vpop.xlane.xlu0 %522
    %v524 = vsel %vm147, %v454, 0.0
    %525 = vadd.xlane.f32.xlu0 %v524
    %v526 = vpop.xlane.xlu0 %525
    %v527 = vsel %vm147, %v455, 0.0
    %528 = vadd.xlane.f32.xlu0 %v527
    %v529 = vpop.xlane.xlu0 %528
    %v530 = vsel %vm147, %v456, 0.0
    %531 = vadd.xlane.f32.xlu0 %v530
    %v532 = vpop.xlane.xlu0 %531
    %v533 = vsel %vm147, %v457, 0.0
    %534 = vadd.xlane.f32.xlu0 %v533
    %v535 = vpop.xlane.xlu0 %534
    %v536 = vsel %vm147, %v458, 0.0
    %537 = vadd.xlane.f32.xlu0 %v536
    %v538 = vpop.xlane.xlu0 %537
    %v539 = vsel %vm147, %v459, 0.0
    %540 = vadd.xlane.f32.xlu0 %v539
    %v541 = vpop.xlane.xlu0 %540
    %v542 = vsel %vm147, %v460, 0.0
    %543 = vadd.xlane.f32.xlu0 %v542
    %v544 = vpop.xlane.xlu0 %543
    %v545 = vsel %vm147, %v461, 0.0
    %546 = vadd.xlane.f32.xlu0 %v545
    %v547 = vpop.xlane.xlu0 %546
    %v548 = vsel %vm147, %v462, 0.0
    %549 = vadd.xlane.f32.xlu0 %v548
    %v550 = vpop.xlane.xlu0 %549
    %v551 = vsel %vm147, %v463, 0.0
    %552 = vadd.xlane.f32.xlu0 %v551
    %v553 = vpop.xlane.xlu0 %552
    %v554 = vsel %vm147, %v464, 0.0
    %555 = vadd.xlane.f32.xlu0 %v554
    %v556 = vpop.xlane.xlu0 %555
    %v557 = vsel %vm147, %v465, 0.0
    %558 = vadd.xlane.f32.xlu0 %v557
    %v559 = vpop.xlane.xlu0 %558
    %v560 = vsel %vm147, %v466, 0.0
    %561 = vadd.xlane.f32.xlu0 %v560
    %v562 = vpop.xlane.xlu0 %561
    %v595 = vlaneseq
    %v596 = vand.u32 %v595, 127
    %v597 = vperm.slane %v469, %v596
    %v598 = vadd.s32 %v596, 4294967288
    %v599 = vperm.slane %v472, %v598
    %vm600 = vcmask 130112
    %v601 = vsel %vm600, %v599, %v597
    %v602 = vadd.s32 %v596, 4294967280
    %v603 = vperm.slane %v475, %v602
    %vm604 = vcmask 195712
    %v605 = vsel %vm604, %v603, %v601
    %v606 = vadd.s32 %v596, 4294967272
    %v607 = vperm.slane %v478, %v606
    %vm608 = vcmask 261312
    %v609 = vsel %vm608, %v607, %v605
    %v610 = vperm.slane %v481, %v596
    %v611 = vperm.slane %v484, %v598
    %v612 = vsel %vm600, %v611, %v610
    %v613 = vperm.slane %v487, %v602
    %v614 = vsel %vm604, %v613, %v612
    %v615 = vperm.slane %v490, %v606
    %v616 = vsel %vm608, %v615, %v614
    %v617 = vperm.slane %v493, %v596
    %v618 = vperm.slane %v496, %v598
    %v619 = vsel %vm600, %v618, %v617
    %v620 = vperm.slane %v499, %v602
    %v621 = vsel %vm604, %v620, %v619
    %v622 = vperm.slane %v502, %v606
    %v623 = vsel %vm608, %v622, %v621
    %v624 = vperm.slane %v505, %v596
    %v625 = vperm.slane %v508, %v598
    %v626 = vsel %vm600, %v625, %v624
    %v627 = vperm.slane %v511, %v602
    %v628 = vsel %vm604, %v627, %v626
    %v629 = vperm.slane %v514, %v606
    %v630 = vsel %vm608, %v629, %v628
    %v631 = vperm.slane %v517, %v596
    %v632 = vperm.slane %v520, %v598
    %v633 = vsel %vm600, %v632, %v631
    %v634 = vperm.slane %v523, %v602
    %v635 = vsel %vm604, %v634, %v633
    %v636 = vperm.slane %v526, %v606
    %v637 = vsel %vm608, %v636, %v635
    %v638 = vperm.slane %v529, %v596
    %v639 = vperm.slane %v532, %v598
    %v640 = vsel %vm600, %v639, %v638
    %v641 = vperm.slane %v535, %v602
    %v642 = vsel %vm604, %v641, %v640
    %v643 = vperm.slane %v538, %v606
    %v644 = vsel %vm608, %v643, %v642
    %v645 = vperm.slane %v541, %v596
    %v646 = vperm.slane %v544, %v598
    %v647 = vsel %vm600, %v646, %v645
    %v648 = vperm.slane %v547, %v602
    %v649 = vsel %vm604, %v648, %v647
    %v650 = vperm.slane %v550, %v606
    %v651 = vsel %vm608, %v650, %v649
    %v652 = vperm.slane %v553, %v596
    %v653 = vperm.slane %v556, %v598
    %v654 = vsel %vm600, %v653, %v652
    %v655 = vperm.slane %v559, %v602
    %v656 = vsel %vm604, %v655, %v654
    %v657 = vperm.slane %v562, %v606
    %v658 = vsel %vm608, %v657, %v656
    %v659 = vsel %vm285, %v616, %v609
    %v660 = vsel %vm288, %v623, %v659
    %v661 = vsel %vm291, %v630, %v660
    %v662 = vsel %vm294, %v637, %v661
    %v663 = vsel %vm297, %v644, %v662
    %v664 = vsel %vm300, %v651, %v663
    %v665 = vsel %vm303, %v658, %v664
    %667 = vst.msk [vmem:[#allocation8] sm:$0xff] %vm86, %v665
    // Predicated region
    $region22: #{tpu_custom_call.1} parent=1 // pred_check
      _
    $region23: #{tpu_custom_call.1} parent=1 // pred_check_branch
      %669 = sbr.rel (0) target = $region25
    $region24: #{tpu_custom_call.1} parent=1 // pred_region
      %671 = vsyncadd [#allocation4], 0
      %s673 = sshll.u32 [#allocation7], 4
      %s674 = int_to_ptr.vmem [resolvable:$true] %s673
      %s675 = sshll.u32 %s3, 4
      %s676 = int_to_ptr.hbm [resolvable:$true] %s675
      %678 = dma.vmem_to_hbm [thread:$0]  %s674, 128, %s676, [#allocation4]
    $region25: #{tpu_custom_call.1} parent=1 // pred_fallthru
      _
    // Predicated region
    $region26: #{tpu_custom_call.1} parent=1 // pred_check
      _
    $region27: #{tpu_custom_call.1} parent=1 // pred_check_branch
      %680 = sbr.rel (0) target = $region29
    $region28: #{tpu_custom_call.1} parent=1 // pred_region
      %682 = vsyncadd [#allocation9], 0
      %s684 = sshll.u32 [#allocation8], 4
      %s685 = int_to_ptr.vmem [resolvable:$true] %s684
      %s686 = sshll.u32 %s4, 4
      %s687 = int_to_ptr.hbm [resolvable:$true] %s686
      %689 = dma.vmem_to_hbm [thread:$0]  %s685, 128, %s687, [#allocation9]
    $region29: #{tpu_custom_call.1} parent=1 // pred_fallthru
      _
    // Predicated region
    $region30: #{tpu_custom_call.1} parent=1 // pred_check
      _
    $region31: #{tpu_custom_call.1} parent=1 // pred_check_branch
      %691 = sbr.rel (0) target = $region33
    $region32: #{tpu_custom_call.1} parent=1 // pred_region
      %693 = dma.done [#allocation4], 128
    $region33: #{tpu_custom_call.1} parent=1 // pred_fallthru
      _
    // Predicated region
    $region34: #{tpu_custom_call.1} parent=1 // pred_check
      _
    $region35: #{tpu_custom_call.1} parent=1 // pred_check_branch
      %695 = sbr.rel (0) target = $region37
    $region36: #{tpu_custom_call.1} parent=1 // pred_region
      %697 = dma.done [#allocation9], 128
    $region37: #{tpu_custom_call.1} parent=1 // pred_fallthru
      _
    %698 = vsyncpa [#allocation3], 1
    %699 = vsyncpa [#allocation6], 1
    %700 = vsyncpa [#allocation4], 1
    %701 = vsyncpa [#allocation9], 1

</llo_original>
